<compile_context>
chip_gen: v7x
topology: tpu7x:2x2x1
jax: 0.10.0
libtpu: 0.0.40
codegen_flags: <defaults>
</compile_context>

<pallas_src>
import functools

import jax
import jax.numpy as jnp
from jax.experimental import pallas as pl
from jax.experimental.pallas import tpu as pltpu

_LANE = 128
_LANE_CHOICES = (2048, 1024, 512, 256, 128)
_SMALL_BLOCK_BYTES = 2 * 1024 * 1024  # whole-array single-block path threshold


def _sublane_multiple(dtype) -> int:
    # Minimum sublane tiling per dtype packing: f32 -> 8, bf16/f16 -> 16, int8/fp8 -> 32.
    itemsize = jnp.dtype(dtype).itemsize
    table = {4: 8, 2: 16, 1: 32}
    if itemsize not in table:
        raise ValueError(f"unsupported dtype for mod_forward: {dtype}")
    return table[itemsize]


def _round_up(v: int, m: int) -> int:
    return (v + m - 1) // m * m


def _chip_tuning():
    """Generation-aware (target_block_bytes, vmem_limit_bytes)."""
    try:
        vmem_cap = pltpu.get_tpu_info().vmem_capacity_bytes
    except Exception:
        vmem_cap = None
    if vmem_cap is not None and vmem_cap >= 100 * 1024 * 1024:
        # v5e / v6e class: 128 MiB VMEM -> large streaming tiles.
        return 6 * 1024 * 1024, 64 * 1024 * 1024
    # v7x class (64 MiB per-TC VMEM) or unknown: stay conservative.
    return 4 * 1024 * 1024, 48 * 1024 * 1024


def _whole_array_vmem_bytes(shape, dtype) -> int:
    """VMEM footprint of the array as one block, including (sub,128) tile padding."""
    sub = _sublane_multiple(dtype)
    itemsize = jnp.dtype(dtype).itemsize
    if len(shape) == 0:
        return sub * _LANE * itemsize
    if len(shape) == 1:
        return _round_up(max(shape[0], 1), sub * _LANE) * itemsize
    lead = 1
    for d in shape[:-2]:
        lead *= d
    return lead * _round_up(shape[-2], sub) * _round_up(shape[-1], _LANE) * itemsize


def _relu_kernel(x_ref, o_ref, *, double: bool):
    x = x_ref[...]
    if double:                       # static — baked in at trace time
        x = x + x
    o_ref[...] = jnp.maximum(x, jnp.zeros_like(x))


def _cost(n: int, itemsize: int, double: bool) -> pl.CostEstimate:
    return pl.CostEstimate(flops=n * (2 if double else 1),
                           transcendentals=0,
                           bytes_accessed=2 * n * itemsize)


def _run_2d(x2d, double, target_block_bytes, vmem_limit_bytes):
    """Lane-dense streaming path for flat sizes divisible by 128."""
    rows, lanes = x2d.shape
    dtype = x2d.dtype
    itemsize = jnp.dtype(dtype).itemsize
    sub = _sublane_multiple(dtype)
    n = rows * lanes

    # Rows per block targeting the generation-specific block size.
    cap = max(sub, (target_block_bytes // (lanes * itemsize)) // sub * sub)

    if rows <= cap:
        # Whole slab in one grid step — no forced split for small tensors.
        block_rows = rows
        nblocks = 1
    else:
        nblocks = pl.cdiv(rows, cap)
        # Even block count lets 2-TC chips (v7x) split the stream evenly;
        # on 1-TC chips the extra (still multi-MiB) step is negligible.
        if nblocks % 2:
            nblocks += 1
        block_rows = _round_up(pl.cdiv(rows, nblocks), sub)
        nblocks = pl.cdiv(rows, block_rows)   # partial last block is masked

    return pl.pallas_call(
        functools.partial(_relu_kernel, double=double),
        out_shape=jax.ShapeDtypeStruct((rows, lanes), dtype),
        grid=(nblocks,),
        in_specs=[pl.BlockSpec((block_rows, lanes), lambda i: (i, 0))],
        out_specs=pl.BlockSpec((block_rows, lanes), lambda i: (i, 0)),
        compiler_params=pltpu.CompilerParams(
            dimension_semantics=("parallel",),
            vmem_limit_bytes=vmem_limit_bytes),
        cost_estimate=_cost(n, itemsize, double),
    )(x2d)


def _run_whole(x, double, vmem_limit_bytes):
    """Single whole-array block (any shape) — used for small ragged tensors."""
    n = x.size
    itemsize = jnp.dtype(x.dtype).itemsize
    return pl.pallas_call(
        functools.partial(_relu_kernel, double=double),
        out_shape=jax.ShapeDtypeStruct(x.shape, x.dtype),
        compiler_params=pltpu.CompilerParams(vmem_limit_bytes=vmem_limit_bytes),
        cost_estimate=_cost(n, itemsize, double),
    )(x)


def mod_forward(x: jax.Array) -> jax.Array:
    """Equivalent of Mod.forward: relu(x + x) if x.shape[0] > 10 else relu(x)."""
    double = x.shape[0] > 10          # static shape check, like torch x.size(0)
    orig_shape = x.shape
    dtype = x.dtype
    n = x.size
    _ = _sublane_multiple(dtype)      # validates supported dtype up front

    target_block_bytes, vmem_limit = _chip_tuning()

    # Widest lane dim (multiple of 128) dividing the flat size -> zero-copy reshape.
    lanes = None
    for w in _LANE_CHOICES:
        if n % w == 0:
            lanes = w
            break

    if lanes is not None:
        x2d = x.reshape(n // lanes, lanes)
        out = _run_2d(x2d, double, target_block_bytes, vmem_limit)
        return out.reshape(orig_shape)

    # Ragged flat size (not a multiple of 128).
    if _whole_array_vmem_bytes(orig_shape, dtype) <= _SMALL_BLOCK_BYTES:
        # Small: one whole-array block, no pad/slice copies at all.
        return _run_whole(x, double, vmem_limit)

    # Large & ragged: stream the 128-aligned bulk through the kernel and
    # finish the (<128-element) tail with plain XLA elementwise.
    # TODO(synk): this rare path still pays one extra HBM copy for the
    # slice + concatenate around the kernel.
    flat = x.reshape(-1)
    n_bulk = (n // _LANE) * _LANE
    bulk2d = flat[:n_bulk].reshape(n_bulk // _LANE, _LANE)
    bulk_out = _run_2d(bulk2d, double, target_block_bytes, vmem_limit).reshape(-1)
    tail = flat[n_bulk:]
    if double:
        tail = tail + tail
    tail_out = jnp.maximum(tail, jnp.zeros_like(tail))
    return jnp.concatenate([bulk_out, tail_out]).reshape(orig_shape)


if __name__ == "__main__":
    key = jax.random.PRNGKey(0)
    k1, k2, k3 = jax.random.split(key, 3)

    # Small NCHW input: batch=2 (<= 10  ->  relu(x) branch).
    x_small = jax.random.normal(k1, (2, 4, 16, 16), dtype=jnp.float32)
    y_small = jax.block_until_ready(mod_forward(x_small))
    assert jnp.allclose(y_small, jnp.maximum(x_small, 0.0)), "small-batch branch mismatch"

    # Larger batch: batch=12 (> 10  ->  relu(x + x) branch).
    x_big = jax.random.normal(k2, (12, 4, 16, 16), dtype=jnp.float32)
    y_big = jax.block_until_ready(mod_forward(x_big))
    assert jnp.allclose(y_big, jnp.maximum(x_big + x_big, 0.0)), "big-batch branch mismatch"

    # Ragged size: exercises the whole-array single-block path (batch=3 <= 10 -> relu(x)).
    x_ragged = jax.random.normal(k3, (3, 5, 7), dtype=jnp.float32)
    y_ragged = jax.block_until_ready(mod_forward(x_ragged))
    assert jnp.allclose(y_ragged, jnp.maximum(x_ragged, 0.0)), "ragged branch mismatch"

    print("KERNEL_OK")
</pallas_src>

<mosaic_0001>
module attributes {stable_mosaic.version = 11 : i64} {
  func.func @_relu_kernel(%arg0: i32, %arg1: memref<1x2048xf32, #tpu.memory_space<vmem>>, %arg2: memref<1x2048xf32, #tpu.memory_space<vmem>>) attributes {dimension_semantics = [#tpu.dimension_semantics<parallel>], iteration_bounds = array<i64: 1>, scalar_prefetch = 0 : i64, scratch_operands = 0 : i64, tpu.core_type = #tpu.core_type<tc>, window_params = [{transform_indices = @transform_0, window_bounds = array<i64: 1, 2048>}, {transform_indices = @transform_1, window_bounds = array<i64: 1, 2048>}]} {
    %c0 = arith.constant 0 : index
    %c0_0 = arith.constant 0 : index
    %0 = vector.load %arg1[%c0, %c0_0] : memref<1x2048xf32, #tpu.memory_space<vmem>>, vector<1x2048xf32>
    %cst = arith.constant 0.000000e+00 : f32
    %1 = vector.broadcast %cst : f32 to vector<1x2048xf32>
    %2 = arith.maximumf %0, %1 : vector<1x2048xf32>
    %c0_1 = arith.constant 0 : index
    %c0_2 = arith.constant 0 : index
    %3 = vector.load %arg2[%c0_1, %c0_2] : memref<1x2048xf32, #tpu.memory_space<vmem>>, vector<1x2048xf32>
    tpu.vector_store %arg2[%c0_1, %c0_2], %2 {strides = array<i32>} : memref<1x2048xf32, #tpu.memory_space<vmem>>, vector<1x2048xf32>,
    return
  }
  func.func @transform_0(%arg0: i32) -> (i32, i32) {
    %c0_i32 = arith.constant 0 : i32
    %c0_i32_0 = arith.constant 0 : i32
    return %arg0, %c0_i32 : i32, i32
  }
  func.func @transform_1(%arg0: i32) -> (i32, i32) {
    %c0_i32 = arith.constant 0 : i32
    %c0_i32_0 = arith.constant 0 : i32
    return %arg0, %c0_i32 : i32, i32
  }
}

</mosaic_0001>

<llo_original>
// kernel: tpu_custom_call.1
$region0: #{tpu_custom_call.1}
  #allocation0 [shape = 'u32[]', space=smem, size = 0x4, offset = 0x4, fixed_abs, tag = 'smem constant byte address 0x4 - core index']
  #allocation1 [shape = 'u32[144,128]{1,0:T(1,128)}', space=vmem, size = 0x12000, scoped, tag = 'internal scratch']
  %s0 = inlined_call_operand.hbm [shape: f32[1,2048], index: 0, kind: input, shape index: {}]
  %s1 = inlined_call_operand.hbm [shape: f32[1,2048], index: 1, kind: output, shape index: {}]
  %s2 = sld [smem:[#allocation0]]
  $region18: #{tpu_custom_call.1} parent=0
    _
  %s4 = ssub.s32 1, %s2
  %s5 = scalar_select 0, %s4, %s2
  $region1: #{tpu_custom_call.1} parent=0
    #allocation2 [shape = 'u8[8192]{0}', space=vmem, size = 0x2000, scoped, tag = 'input window, operand 0, single buffered']
    #allocation3 [shape = 's32[1]{0}', space=sflag, size = 0x4, scoped, tag = 'scoped memory for tpu_custom_call.1']
    #allocation4 [shape = 's32[1]{0}', space=sflag, size = 0x4, scoped, tag = 'scoped memory for tpu_custom_call.1']
    #allocation5 [shape = 'u8[8192]{0}', space=vmem, size = 0x2000, scoped, tag = 'output window, operand 0, single buffered']
    %6 = vsyncpa [#allocation3], 0
    %7 = vsyncpa [#allocation4], 0
    // Predicated region
    $region2: #{tpu_custom_call.1} parent=1 // pred_check
      _
    $region3: #{tpu_custom_call.1} parent=1 // pred_check_branch
      %9 = sbr.rel (0) target = $region5
    $region4: #{tpu_custom_call.1} parent=1 // pred_region
      %s11 = ssub.s32 256, 256
      %12 = vsyncadd [#allocation3], %s11
      %s14 = sshll.u32 [#allocation2], 4
      %s15 = int_to_ptr.vmem [resolvable:$true] %s14
      %17 = dma.hbm_to_vmem [thread:$0]  %s0, 256, %s15, [#allocation3]
    $region5: #{tpu_custom_call.1} parent=1 // pred_fallthru
      _
    // Predicated region
    $region6: #{tpu_custom_call.1} parent=1 // pred_check
      _
    $region7: #{tpu_custom_call.1} parent=1 // pred_check_branch
      %19 = sbr.rel (0) target = $region9
    $region8: #{tpu_custom_call.1} parent=1 // pred_region
      %20 = dma.done [#allocation3], 256
    $region9: #{tpu_custom_call.1} parent=1 // pred_fallthru
      _
    %v21 = vld [vmem:[#allocation2] sm:$0xff]
    %v22 = vld [vmem:[#allocation2 + $0x8] sm:$0xff]
    %v23 = vmax.f32 %v21, 0.0
    %v24 = vmax.f32 %v22, 0.0
    %25 = vst [vmem:[#allocation5] sm:$0xff] %v23
    %26 = vst [vmem:[#allocation5 + $0x8] sm:$0xff] %v24
    // Predicated region
    $region10: #{tpu_custom_call.1} parent=1 // pred_check
      _
    $region11: #{tpu_custom_call.1} parent=1 // pred_check_branch
      %28 = sbr.rel (0) target = $region13
    $region12: #{tpu_custom_call.1} parent=1 // pred_region
      %s30 = ssub.s32 256, 256
      %31 = vsyncadd [#allocation4], %s30
      %s33 = sshll.u32 [#allocation5], 4
      %s34 = int_to_ptr.vmem [resolvable:$true] %s33
      %36 = dma.vmem_to_hbm [thread:$0]  %s34, 256, %s1, [#allocation4]
    $region13: #{tpu_custom_call.1} parent=1 // pred_fallthru
      _
    // Predicated region
    $region14: #{tpu_custom_call.1} parent=1 // pred_check
      _
    $region15: #{tpu_custom_call.1} parent=1 // pred_check_branch
      %38 = sbr.rel (0) target = $region17
    $region16: #{tpu_custom_call.1} parent=1 // pred_region
      %39 = dma.done [#allocation4], 256
    $region17: #{tpu_custom_call.1} parent=1 // pred_fallthru
      _
    %40 = vsyncpa [#allocation3], 1
    %41 = vsyncpa [#allocation4], 1

</llo_original>
